<compile_context>
chip_gen: v7x
topology: tpu7x:2x2x1
jax: 0.10.0
libtpu: 0.0.40
codegen_flags: <defaults>
</compile_context>

<pallas_src>
import math

import jax
import jax.numpy as jnp
from jax import lax
from jax.experimental import pallas as pl
from jax.experimental.pallas import tpu as pltpu


# ----------------------------------------------------------------------------
# hardware-aware helpers (generation-gated: v5e vs v6e/v7x)
# ----------------------------------------------------------------------------
def _device_kind():
    try:
        return jax.devices()[0].device_kind.lower()
    except Exception:
        return ""


def _is_older_gen():
    kind = _device_kind()
    return (kind == "") or any(g in kind for g in ("v2", "v3", "v4", "v5"))


def _vmem_capacity_bytes():
    try:
        cap = int(pltpu.get_tpu_info().vmem_capacity_bytes)
        if cap > 0:
            return cap
    except Exception:
        pass
    kind = _device_kind()
    return (64 << 20) if ("v7" in kind or "7x" in kind) else (128 << 20)


def _mxu_rows():
    # v5e: 4x128^2 MXU -> 128 rows fill it; v6e/v7x: 2x256^2 -> 256 rows.
    return 128 if _is_older_gen() else 256


def _supports_bf16_elementwise():
    # v5e's VPU/EUP have no bf16; bf16 elementwise only on v6e/v7x.
    return not _is_older_gen()


# ----------------------------------------------------------------------------
# tiling / VMEM helpers
# ----------------------------------------------------------------------------
def _round_up(x, m):
    return ((x + m - 1) // m) * m


def _pick_batch_tile(b, row_bytes, vmem_budget):
    """Largest layout-legal batch tile whose streamed VMEM footprint fits.

    Candidates are divisors of b that are multiples of 8, plus b itself (a
    full-extent block is always legal for the (8,128) constraint).
    """
    cands = sorted({t for t in range(8, b + 1, 8) if b % t == 0} | {b})
    if b >= 16:                       # keep >=2 grid steps: both v7x cores get work
        split = [t for t in cands if t <= b // 2 and t % 8 == 0]
        if split:
            cands = split
    capped = [t for t in cands if t <= _mxu_rows()]   # no point exceeding MXU rows
    if capped:
        cands = capped
    fitting = [t for t in cands if t * row_bytes <= vmem_budget]
    return (fitting or cands[:1])[-1]


def _pick_row_tile(rows, row_bytes, vmem_budget, max_tile=2048):
    cap = min(rows, max_tile, max(8, vmem_budget // max(1, row_bytes)))
    cands = [t for t in range(8, rows + 1, 8) if rows % t == 0 and t <= cap]
    return max(cands) if cands else rows     # full extent is always layout-legal


def _pick_score_chunk(s, tb, h, ew_bytes, target_bytes=1 << 20):
    """Seq chunk so the (TB, CS, H) tanh intermediate stays ~<= 1 MiB."""
    max_cs = max(8, target_bytes // max(1, tb * h * ew_bytes))
    if s <= max_cs:
        return s
    divs = [d for d in range(8, s, 8) if s % d == 0 and d <= max_cs]
    return max(divs) if divs else s


def _invariant_spec(shape, itemsize):
    """Grid-invariant operand (weights / bias rows): constant index_map.

    The second pipeline buffer is redundant for constant-index blocks; drop it
    once it is big enough to matter for VMEM headroom (v7x: only 64 MiB).
    """
    idx = lambda *_: (0,) * len(shape)
    if 2 * math.prod(shape) * itemsize > (2 << 20):
        return pl.BlockSpec(shape, idx, pipeline_mode=pl.Buffered(1))
    return pl.BlockSpec(shape, idx)


def _vmem_limit(streamed_bytes, fixed_bytes):
    cap = _vmem_capacity_bytes()
    est = streamed_bytes + fixed_bytes
    return int(min((3 * cap) // 4, max(32 << 20, 2 * est)))


# ----------------------------------------------------------------------------
# parameter preparation (one-time transposes / folding / dtype casts)
# ----------------------------------------------------------------------------
def prepare_params(params, *, matmul_dtype=jnp.bfloat16, store_dtype=jnp.bfloat16):
    """PyTorch weights are (out, in); kernels want (in, out): transpose once.

    wa_b + ua_b fold into one row (added to Uk); va_b is dropped (a constant
    score shift cancels exactly in softmax).  `store_dtype` is the HBM storage
    dtype of Uk / keys (re-read every decode step -> bf16 halves that traffic).
    `ew_dtype` (score tanh path) is bf16 only on v6e/v7x.
    """
    h = params["wa_w"].shape[0]
    ew = (jnp.bfloat16 if (jnp.dtype(matmul_dtype) == jnp.dtype(jnp.bfloat16)
                           and _supports_bf16_elementwise()) else jnp.float32)
    prep = {
        "hidden_size": h,
        "mm_dtype": jnp.dtype(matmul_dtype),
        "store_dtype": jnp.dtype(store_dtype),
        "ew_dtype": jnp.dtype(ew),
        "wa_t": params["wa_w"].T.astype(matmul_dtype),                       # (H, H)
        "ua_t": params["ua_w"].T.astype(matmul_dtype),                       # (H, H)
        "attn_bias": (params["wa_b"] + params["ua_b"]).reshape(1, h).astype(jnp.float32),
        "va_row": params["va_w"].reshape(1, h).astype(jnp.float32),
    }
    if "w_ih" in params:                                                     # GRU + output head
        wih = params["w_ih"]                                                 # (3H, 2H)
        prep.update({
            "wih_emb": wih[:, :h].T.astype(matmul_dtype),                    # (H, 3H)
            "wih_ctx": wih[:, h:].T.astype(matmul_dtype),                    # (H, 3H)
            "whh_t": params["w_hh"].T.astype(matmul_dtype),                  # (H, 3H)
            "b_ih": params["b_ih"].reshape(1, 3 * h).astype(jnp.float32),
            "b_hh": params["b_hh"].reshape(1, 3 * h).astype(jnp.float32),
            "wout_t": params["w_out"].T.astype(matmul_dtype),                # (H, O)
            "b_out": params["b_out"].reshape(1, -1).astype(jnp.float32),
            "embedding": params["embedding"],
        })
    return prep


# ----------------------------------------------------------------------------
# generic row-dense Linear kernel: (rows, IN) @ (IN, OUT) + bias
# (used for the once-per-sequence Uk precompute and for the output Linear)
# ----------------------------------------------------------------------------
def _rowmat_kernel(x_ref, w_ref, b_ref, o_ref):
    y = jnp.dot(x_ref[...], w_ref[...], preferred_element_type=jnp.float32)
    o_ref[...] = (y + b_ref[...]).astype(o_ref.dtype)


def _rows_linear(x, w_t, b_row, out_dtype):
    rows, din = x.shape
    dout = w_t.shape[1]
    xb, wb = x.dtype.itemsize, w_t.dtype.itemsize
    ob = jnp.dtype(out_dtype).itemsize
    row_bytes = 2 * (din * xb + dout * ob) + 4 * dout           # streamed blocks + f32 temp
    fixed = 2 * (din * dout * wb + dout * 4)                    # weight + bias row
    budget = int(0.55 * _vmem_capacity_bytes())
    tile_r = _pick_row_tile(rows, row_bytes, max(budget - fixed, row_bytes))
    return pl.pallas_call(
        _rowmat_kernel,
        out_shape=jax.ShapeDtypeStruct((rows, dout), out_dtype),
        grid_spec=pltpu.PrefetchScalarGridSpec(
            num_scalar_prefetch=0,
            grid=(rows // tile_r,),
            in_specs=[
                pl.BlockSpec((tile_r, din), lambda r: (r, 0)),
                _invariant_spec((din, dout), wb),
                _invariant_spec((1, dout), 4),
            ],
            out_specs=pl.BlockSpec((tile_r, dout), lambda r: (r, 0)),
        ),
        compiler_params=pltpu.CompilerParams(
            dimension_semantics=("parallel",),
            vmem_limit_bytes=_vmem_limit(tile_r * row_bytes, fixed),
        ),
    )(x, w_t, b_row)


def precompute_attention_keys(keys, prep):
    """Uk = Ua(keys) + (wa_b + ua_b): timestep-invariant, run once per sequence.

    Stored in prep['store_dtype'] (bf16 by default) because Uk is re-read from
    HBM every decode step.
    """
    b, s, h = keys.shape
    keys2 = keys.reshape(b * s, h).astype(prep["mm_dtype"])
    uk = _rows_linear(keys2, prep["ua_t"], prep["attn_bias"], prep["store_dtype"])
    return uk.reshape(b, s, h)


# ----------------------------------------------------------------------------
# Bahdanau attention core (shared by the per-step and the fused-decode kernel)
# ----------------------------------------------------------------------------
def _attention_core(q, k_ref, uk_ref, wa_ref, va_ref, sc_ref, *,
                    s, s_pad, cs, ew_dtype, mm_dtype):
    """q: (TB, H) query rows; k_ref/uk_ref: (TB, S, H); wa_ref: (H, H) = Wa^T;
    va_ref: (1, H); sc_ref: (TB, S_pad) f32 scratch.
    Returns (context (TB, H) f32, weights (TB, S_pad) f32, exact 0 in pad cols).
    Score path is chunked over S so the tanh intermediate stays small."""
    tb, h = q.shape
    n_chunks = s // cs
    unroll = n_chunks <= 8

    wq = jnp.dot(q.astype(mm_dtype), wa_ref[...],
                 preferred_element_type=jnp.float32)               # (TB, H) f32 (MXU)
    wq_e = wq.astype(ew_dtype)
    va_e = va_ref[...].astype(ew_dtype)                             # (1, H)

    def scores_for(uk_blk):
        e = jnp.tanh(wq_e[:, None, :] + uk_blk.astype(ew_dtype))   # VPU add + EUP tanh
        return jnp.sum((e * va_e).astype(jnp.float32), axis=-1)    # XLU lane reduce, f32

    if s_pad > s:   # pad columns -> -inf -> exactly 0 after softmax
        sc_ref[...] = jnp.full((tb, s_pad), -jnp.inf, dtype=jnp.float32)
    if n_chunks == 1:
        sc_ref[:, 0:s] = scores_for(uk_ref[...])
    else:
        def sc_body(c, carry):
            off = pl.multiple_of(c * cs, cs)
            sc_ref[:, pl.ds(off, cs)] = scores_for(uk_ref[:, pl.ds(off, cs), :])
            return carry
        lax.fori_loop(0, n_chunks, sc_body, 0, unroll=unroll)

    sc = sc_ref[...]                                               # (TB, S_pad) f32
    m = jnp.max(sc, axis=-1, keepdims=True)
    p = jnp.exp(sc - m)
    denom = jnp.sum(p, axis=-1, keepdims=True)
    w_pad = p * pl.reciprocal(denom, approx=False)                 # exact: rows sum to 1

    if n_chunks == 1:
        ctx = jnp.sum(w_pad[:, 0:s, None] * k_ref[...].astype(jnp.float32), axis=1)
    else:
        sc_ref[...] = w_pad                                        # reuse scratch for pass 2
        def ctx_body(c, acc):
            off = pl.multiple_of(c * cs, cs)
            k_c = k_ref[:, pl.ds(off, cs), :].astype(jnp.float32)
            w_c = sc_ref[:, pl.ds(off, cs)]
            return acc + jnp.sum(w_c[:, :, None] * k_c, axis=1)
        ctx = lax.fori_loop(0, n_chunks, ctx_body,
                            jnp.zeros((tb, h), jnp.float32), unroll=unroll)
    return ctx, w_pad


# ----------------------------------------------------------------------------
# per-step attention kernel (greedy decode path: steps cannot be batched)
# ----------------------------------------------------------------------------
def _make_attn_step_kernel(*, s, s_pad, cs, ew_dtype, mm_dtype):
    def kernel(q_ref, k_ref, uk_ref, wa_ref, va_ref, ctx_ref, w_ref, sc_ref):
        ctx, w_pad = _attention_core(q_ref[...], k_ref, uk_ref, wa_ref, va_ref, sc_ref,
                                     s=s, s_pad=s_pad, cs=cs,
                                     ew_dtype=ew_dtype, mm_dtype=mm_dtype)
        ctx_ref[...] = ctx.astype(ctx_ref.dtype)
        w_ref[...] = w_pad.astype(w_ref.dtype)
    return kernel


def attention_step(query, keys, uk, prep, *, score_chunk=None):
    """One decoder step of Bahdanau attention, reusing precomputed Uk.

    query: (B, 1, H) or (B, H); keys: (B, S, H); uk: (B, S, H).
    Returns (context (B, 1, H), weights (B, 1, S)), both float32.
    """
    b, s, h = keys.shape
    s_pad = _round_up(s, 128)                 # lane-dense weights output slab
    mm, ew, st = prep["mm_dtype"], prep["ew_dtype"], prep["store_dtype"]
    q2 = query.reshape(b, h).astype(mm)
    keys_k = keys.astype(st)

    kb, ub = keys_k.dtype.itemsize, uk.dtype.itemsize
    row_bytes = (2 * s * h * (kb + ub)        # keys + Uk blocks (double-buffered)
                 + 2 * h * (mm.itemsize + 4)  # query in / context out
                 + 3 * s_pad * 4              # weights out + score scratch
                 + 4 * s * h)                 # worst-case f32 chunk temporaries
    fixed = 2 * (h * h * mm.itemsize + 2 * h * 4) + (4 << 20)
    budget = int(0.55 * _vmem_capacity_bytes())
    tb = _pick_batch_tile(b, row_bytes, max(budget - fixed, row_bytes))
    cs = score_chunk or _pick_score_chunk(s, tb, h, ew.itemsize)
    assert s % cs == 0, "score chunk must divide S"

    kernel = _make_attn_step_kernel(s=s, s_pad=s_pad, cs=cs, ew_dtype=ew, mm_dtype=mm)
    ctx, w = pl.pallas_call(
        kernel,
        out_shape=(jax.ShapeDtypeStruct((b, h), jnp.float32),
                   jax.ShapeDtypeStruct((b, s_pad), jnp.float32)),
        grid_spec=pltpu.PrefetchScalarGridSpec(
            num_scalar_prefetch=0,
            grid=(b // tb,),
            in_specs=[
                pl.BlockSpec((tb, h), lambda i: (i, 0)),           # query rows
                pl.BlockSpec((tb, s, h), lambda i: (i, 0, 0)),     # keys
                pl.BlockSpec((tb, s, h), lambda i: (i, 0, 0)),     # precomputed Uk
                _invariant_spec((h, h), mm.itemsize),              # Wa^T
                _invariant_spec((1, h), 4),                        # Va row
            ],
            out_specs=[
                pl.BlockSpec((tb, h), lambda i: (i, 0)),
                pl.BlockSpec((tb, s_pad), lambda i: (i, 0)),
            ],
            scratch_shapes=[pltpu.VMEM((tb, s_pad), jnp.float32)],
        ),
        compiler_params=pltpu.CompilerParams(
            dimension_semantics=("parallel",),
            vmem_limit_bytes=_vmem_limit(tb * row_bytes, fixed),
        ),
    )(q2, keys_k, uk, prep["wa_t"], prep["va_row"])
    return ctx.reshape(b, 1, h), w[:, :s].reshape(b, 1, s)


def bahdanau_attention(query, keys, prep):
    """BahdanauAttention.forward(query, keys) -> (context, weights)."""
    uk = precompute_attention_keys(keys, prep)
    return attention_step(query, keys, uk, prep)


# ----------------------------------------------------------------------------
# fused teacher-forced decode loop: attention + GRU cell, keys/Uk resident
# ----------------------------------------------------------------------------
def _sigmoid(x):
    return 1.0 / (1.0 + jnp.exp(-x))


def _make_decode_kernel(*, s, s_pad, cs, h, ew_dtype, mm_dtype):
    def kernel(emb_ref, h0_ref, k_ref, uk_ref,
               wa_ref, va_ref, wih_e_ref, wih_c_ref, whh_ref, bih_ref, bhh_ref,
               hs_ref, w_ref, h_scr, sc_scr):
        t = pl.program_id(1)

        @pl.when(t == 0)
        def _():                                    # fresh batch tile: load encoder hidden
            h_scr[...] = h0_ref[...].astype(jnp.float32)

        hprev = h_scr[...]                          # (TB, H) f32, carried across steps

        # ---- Bahdanau attention on the carried hidden state (= query) -------
        ctx, w_pad = _attention_core(hprev, k_ref, uk_ref, wa_ref, va_ref, sc_scr,
                                     s=s, s_pad=s_pad, cs=cs,
                                     ew_dtype=ew_dtype, mm_dtype=mm_dtype)

        # ---- GRU cell on [embedded_token, context] ---------------------------
        emb = emb_ref[0].astype(mm_dtype)                                        # (TB, H)
        gi = (jnp.dot(emb, wih_e_ref[...], preferred_element_type=jnp.float32)
              + jnp.dot(ctx.astype(mm_dtype), wih_c_ref[...],
                        preferred_element_type=jnp.float32)
              + bih_ref[...])                                                    # (TB, 3H)
        gh = (jnp.dot(hprev.astype(mm_dtype), whh_ref[...],
                      preferred_element_type=jnp.float32) + bhh_ref[...])        # (TB, 3H)
        r = _sigmoid(gi[:, 0:h] + gh[:, 0:h])
        z = _sigmoid(gi[:, h:2 * h] + gh[:, h:2 * h])
        n = jnp.tanh(gi[:, 2 * h:3 * h] + r * gh[:, 2 * h:3 * h])
        hnew = (1.0 - z) * n + z * hprev

        h_scr[...] = hnew
        hs_ref[0] = hnew.astype(hs_ref.dtype)
        w_ref[0] = w_pad.astype(w_ref.dtype)
    return kernel


def _decode_pallas(emb_t, h0, keys, uk, prep):
    t_len, b, h = emb_t.shape
    s = keys.shape[1]
    s_pad = _round_up(s, 128)
    mm, ew = prep["mm_dtype"], prep["ew_dtype"]
    kb, ub = keys.dtype.itemsize, uk.dtype.itemsize
    three_h = 3 * h

    row_bytes = (2 * s * h * (kb + ub)              # keys + Uk (2 bufs over batch tiles)
                 + 2 * h * (mm.itemsize + 4 + 4)    # embedded in, h0 in, hidden out
                 + 2 * s_pad * 4                    # attn-weights out
                 + h * 4 + s_pad * 4                # hidden + score scratch
                 + 4 * s * h + 16 * h * 4)          # chunk temporaries + GRU gate temps
    fixed = (2 * (h * h + 3 * h * three_h) * mm.itemsize
             + 2 * (2 * three_h + 2 * h) * 4
             + (4 << 20))
    budget = int(0.55 * _vmem_capacity_bytes())
    tb = _pick_batch_tile(b, row_bytes, max(budget - fixed, row_bytes))
    cs = _pick_score_chunk(s, tb, h, ew.itemsize)

    kernel = _make_decode_kernel(s=s, s_pad=s_pad, cs=cs, h=h, ew_dtype=ew, mm_dtype=mm)
    return pl.pallas_call(
        kernel,
        out_shape=(jax.ShapeDtypeStruct((t_len, b, h), jnp.float32),
                   jax.ShapeDtypeStruct((t_len, b, s_pad), jnp.float32)),
        grid_spec=pltpu.PrefetchScalarGridSpec(
            num_scalar_prefetch=0,
            grid=(b // tb, t_len),                   # batch tiles outer, decode steps inner
            in_specs=[
                pl.BlockSpec((1, tb, h), lambda i, t: (t, i, 0)),      # embedded tokens
                pl.BlockSpec((tb, h), lambda i, t: (i, 0)),            # initial hidden
                pl.BlockSpec((tb, s, h), lambda i, t: (i, 0, 0)),      # keys (t-invariant)
                pl.BlockSpec((tb, s, h), lambda i, t: (i, 0, 0)),      # Uk   (t-invariant)
                _invariant_spec((h, h), mm.itemsize),                  # Wa^T
                _invariant_spec((1, h), 4),                            # Va row
                _invariant_spec((h, three_h), mm.itemsize),            # W_ih[:, :H]^T
                _invariant_spec((h, three_h), mm.itemsize),            # W_ih[:, H:]^T
                _invariant_spec((h, three_h), mm.itemsize),            # W_hh^T
                _invariant_spec((1, three_h), 4),                      # b_ih
                _invariant_spec((1, three_h), 4),                      # b_hh
            ],
            out_specs=[
                pl.BlockSpec((1, tb, h), lambda i, t: (t, i, 0)),      # per-step hidden
                pl.BlockSpec((1, tb, s_pad), lambda i, t: (t, i, 0)),  # per-step attn weights
            ],
            scratch_shapes=[pltpu.VMEM((tb, h), jnp.float32),          # carried hidden
                            pltpu.VMEM((tb, s_pad), jnp.float32)],     # score/weight scratch
        ),
        compiler_params=pltpu.CompilerParams(
            dimension_semantics=("parallel", "arbitrary"),
            vmem_limit_bytes=_vmem_limit(tb * row_bytes, fixed),
        ),
    )(emb_t, h0, keys, uk, prep["wa_t"], prep["va_row"],
      prep["wih_emb"], prep["wih_ctx"], prep["whh_t"], prep["b_ih"], prep["b_hh"])


def attn_decoder_forward(prep, encoder_outputs, encoder_hidden, target_tensor):
    """AttnDecoderRNN.forward (teacher-forced path) with a Pallas-fused decode loop.

    Returns (log_probs (T, B, output_size), decoder_hidden (1, B, H), attentions (B, T, S)).
    """
    b, s, h = encoder_outputs.shape
    t_len = target_tensor.shape[1]

    # TODO(synk): embedding gather + dropout (identity at eval), final log_softmax and the
    # greedy argmax-feedback loop are left to plain JAX/XLA.
    tokens = jnp.concatenate(
        [jnp.zeros((b, 1), target_tensor.dtype), target_tensor[:, :-1]], axis=1)   # SOS = 0
    embedded = jnp.take(prep["embedding"], tokens, axis=0)                          # (B, T, H)

    uk = precompute_attention_keys(encoder_outputs, prep)                           # (B, S, H)
    keys_k = encoder_outputs.astype(prep["store_dtype"])
    emb_t = jnp.transpose(embedded, (1, 0, 2)).astype(prep["mm_dtype"])             # (T, B, H)
    h0 = encoder_hidden.reshape(b, h).astype(jnp.float32)

    hs, w_pad = _decode_pallas(emb_t, h0, keys_k, uk, prep)     # (T,B,H) f32, (T,B,S_pad) f32

    logits = _rows_linear(hs.reshape(t_len * b, h).astype(prep["mm_dtype"]),
                          prep["wout_t"], prep["b_out"], jnp.float32)
    log_probs = jax.nn.log_softmax(logits.reshape(t_len, b, -1), axis=-1)
    return log_probs, hs[-1][None], jnp.transpose(w_pad[:, :, :s], (1, 0, 2))


# ----------------------------------------------------------------------------
# pure-JAX references (mirror the PyTorch module exactly, including va_b)
# ----------------------------------------------------------------------------
def bahdanau_attention_ref(query, keys, params):
    wq = query @ params["wa_w"].T + params["wa_b"]
    uk = keys @ params["ua_w"].T + params["ua_b"]
    scores = jnp.tanh(wq + uk) @ params["va_w"].T + params["va_b"]
    scores = jnp.transpose(scores, (0, 2, 1))
    weights = jax.nn.softmax(scores, axis=-1)
    context = jnp.einsum("bqs,bsh->bqh", weights, keys)
    return context, weights


def _gru_cell_ref(x, hid, params):
    hsz = hid.shape[-1]
    gi = x @ params["w_ih"].T + params["b_ih"]
    gh = hid @ params["w_hh"].T + params["b_hh"]
    r = jax.nn.sigmoid(gi[:, :hsz] + gh[:, :hsz])
    z = jax.nn.sigmoid(gi[:, hsz:2 * hsz] + gh[:, hsz:2 * hsz])
    n = jnp.tanh(gi[:, 2 * hsz:] + r * gh[:, 2 * hsz:])
    return (1.0 - z) * n + z * hid


def attn_decoder_ref(params, encoder_outputs, encoder_hidden, target_tensor):
    b, s, hsz = encoder_outputs.shape
    t_len = target_tensor.shape[1]
    tokens = jnp.concatenate(
        [jnp.zeros((b, 1), target_tensor.dtype), target_tensor[:, :-1]], axis=1)
    hid = encoder_hidden[0]
    outs, attns = [], []
    for t in range(t_len):
        ctx, w = bahdanau_attention_ref(hid[:, None, :], encoder_outputs, params)
        emb = params["embedding"][tokens[:, t]]
        x = jnp.concatenate([emb, ctx[:, 0, :]], axis=-1)
        hid = _gru_cell_ref(x, hid, params)
        outs.append(hid)
        attns.append(w[:, 0, :])
    hs = jnp.stack(outs, axis=1)
    logits = hs @ params["w_out"].T + params["b_out"]
    log_probs = jax.nn.log_softmax(logits, axis=-1)
    return (jnp.transpose(log_probs, (1, 0, 2)), hid[None], jnp.stack(attns, axis=1))


# ----------------------------------------------------------------------------
# demo / correctness checks
# ----------------------------------------------------------------------------
if __name__ == "__main__":
    B, S, H, O = 4, 16, 128, 128     # hidden_size = output_size = 128 (module defaults)
    T = 6                            # short decode for the demo (MAX_LENGTH=160 in the module)
    key = jax.random.PRNGKey(0)
    ks = jax.random.split(key, 16)

    encoder_outputs = jax.random.normal(ks[0], (B, S, H), dtype=jnp.float32)
    encoder_hidden = jax.random.normal(ks[1], (1, B, H), dtype=jnp.float32)
    query = jnp.transpose(encoder_hidden, (1, 0, 2))                # hidden.permute(1,0,2)
    target_tensor = jax.random.randint(ks[2], (B, T), 0, O, dtype=jnp.int32)

    params = {
        "wa_w": jax.random.normal(ks[3], (H, H), jnp.float32) * 0.1,
        "wa_b": jax.random.normal(ks[4], (H,), jnp.float32) * 0.1,
        "ua_w": jax.random.normal(ks[5], (H, H), jnp.float32) * 0.1,
        "ua_b": jax.random.normal(ks[6], (H,), jnp.float32) * 0.1,
        "va_w": jax.random.normal(ks[7], (1, H), jnp.float32) * 0.1,
        "va_b": jax.random.normal(ks[8], (1,), jnp.float32) * 0.1,
        "w_ih": jax.random.normal(ks[9], (3 * H, 2 * H), jnp.float32) * 0.1,
        "b_ih": jax.random.normal(ks[10], (3 * H,), jnp.float32) * 0.1,
        "w_hh": jax.random.normal(ks[11], (3 * H, H), jnp.float32) * 0.1,
        "b_hh": jax.random.normal(ks[12], (3 * H,), jnp.float32) * 0.1,
        "w_out": jax.random.normal(ks[13], (O, H), jnp.float32) * 0.1,
        "b_out": jax.random.normal(ks[14], (O,), jnp.float32) * 0.1,
        "embedding": jax.random.normal(ks[15], (O, H), jnp.float32) * 0.1,
    }

    # --- 1) single attention step, full-precision config ------------------------------
    prep_f32 = prepare_params(params, matmul_dtype=jnp.float32, store_dtype=jnp.float32)
    ctx, w = bahdanau_attention(query, encoder_outputs, prep_f32)
    jax.block_until_ready((ctx, w))
    ctx_ref, w_ref = bahdanau_attention_ref(query, encoder_outputs, params)
    assert ctx.shape == (B, 1, H) and w.shape == (B, 1, S), "bad attention output shapes"
    assert jnp.allclose(ctx, ctx_ref, atol=5e-3, rtol=5e-3), "context mismatch (f32)"
    assert jnp.allclose(w, w_ref, atol=5e-3, rtol=5e-3), "weights mismatch (f32)"
    assert jnp.allclose(jnp.sum(w, axis=-1), 1.0, atol=1e-4), "softmax not normalized"

    # exercise the chunked score/context path explicitly (2 chunks of 8)
    uk_f32 = precompute_attention_keys(encoder_outputs, prep_f32)
    ctx_c, w_c = attention_step(query, encoder_outputs, uk_f32, prep_f32, score_chunk=8)
    assert jnp.allclose(ctx_c, ctx_ref, atol=5e-3, rtol=5e-3), "context mismatch (chunked)"
    assert jnp.allclose(w_c, w_ref, atol=5e-3, rtol=5e-3), "weights mismatch (chunked)"

    # --- 2) single attention step, performance config (bf16 Uk / keys / MXU) ----------
    prep_perf = prepare_params(params)      # bf16 matmuls + bf16 Uk/keys storage
    ctx_bf, w_bf = bahdanau_attention(query, encoder_outputs, prep_perf)
    jax.block_until_ready((ctx_bf, w_bf))
    assert jnp.allclose(ctx_bf, ctx_ref, atol=5e-2, rtol=5e-2), "context mismatch (bf16)"
    assert jnp.allclose(w_bf, w_ref, atol=5e-2, rtol=5e-2), "weights mismatch (bf16)"

    # --- 3) fused teacher-forced decode loop (attention + GRU, keys/Uk resident) ------
    lp, hid, attn = attn_decoder_forward(prep_f32, encoder_outputs, encoder_hidden,
                                         target_tensor)
    jax.block_until_ready((lp, hid, attn))
    lp_r, hid_r, attn_r = attn_decoder_ref(params, encoder_outputs, encoder_hidden,
                                           target_tensor)
    assert lp.shape == (T, B, O) and hid.shape == (1, B, H) and attn.shape == (B, T, S)
    assert jnp.allclose(attn, attn_r, atol=2e-2, rtol=2e-2), "attentions mismatch (decoder f32)"
    assert jnp.allclose(hid, hid_r, atol=2e-2, rtol=2e-2), "hidden mismatch (decoder f32)"
    assert jnp.allclose(lp, lp_r, atol=5e-2, rtol=5e-2), "log-probs mismatch (decoder f32)"

    # --- 4) fused decoder, performance config: runs + attention rows normalized -------
    lp_b, hid_b, attn_b = attn_decoder_forward(prep_perf, encoder_outputs, encoder_hidden,
                                               target_tensor)
    jax.block_until_ready((lp_b, hid_b, attn_b))
    assert lp_b.shape == (T, B, O) and attn_b.shape == (B, T, S)
    assert bool(jnp.all(jnp.isfinite(lp_b))), "non-finite decoder output (bf16)"
    assert jnp.allclose(jnp.sum(attn_b, axis=-1), 1.0, atol=1e-2), "attn rows not normalized"

    print("KERNEL_OK")
</pallas_src>

<mosaic_0001>
module attributes {stable_mosaic.version = 11 : i64} {
  func.func @_rowmat_kernel(%arg0: i32, %arg1: memref<64x128xf32, #tpu.memory_space<vmem>>, %arg2: memref<128x128xf32, #tpu.memory_space<vmem>>, %arg3: memref<1x128xf32, #tpu.memory_space<vmem>>, %arg4: memref<64x128xf32, #tpu.memory_space<vmem>>) attributes {dimension_semantics = [#tpu.dimension_semantics<parallel>], iteration_bounds = array<i64: 1>, scalar_prefetch = 0 : i64, scratch_operands = 0 : i64, tpu.core_type = #tpu.core_type<tc>, window_params = [{transform_indices = @transform_0, window_bounds = array<i64: 64, 128>}, {pipeline_mode = #tpu.pipeline_mode<synchronous>, transform_indices = @transform_1, window_bounds = array<i64: 128, 128>}, {pipeline_mode = #tpu.pipeline_mode<synchronous>, transform_indices = @transform_2, window_bounds = array<i64: 1, 128>}, {transform_indices = @transform_3, window_bounds = array<i64: 64, 128>}]} {
    %c0 = arith.constant 0 : index
    %c0_0 = arith.constant 0 : index
    %0 = vector.load %arg1[%c0, %c0_0] : memref<64x128xf32, #tpu.memory_space<vmem>>, vector<64x128xf32>
    %c0_1 = arith.constant 0 : index
    %c0_2 = arith.constant 0 : index
    %1 = vector.load %arg2[%c0_1, %c0_2] : memref<128x128xf32, #tpu.memory_space<vmem>>, vector<128x128xf32>
    %cst = arith.constant dense<0.000000e+00> : vector<64x128xf32>
    %2 = tpu.matmul %0, %1, %cst {dimension_numbers = #tpu.dot_dimension_numbers<[1], [0], [0], [1], [0, 0, 1, 1], [], []>} : vector<64x128xf32>, vector<128x128xf32>, vector<64x128xf32> -> vector<64x128xf32>
    %c0_3 = arith.constant 0 : index
    %c0_4 = arith.constant 0 : index
    %3 = vector.load %arg3[%c0_3, %c0_4] : memref<1x128xf32, #tpu.memory_space<vmem>>, vector<1x128xf32>
    %4 = vector.broadcast %3 : vector<1x128xf32> to vector<64x128xf32>
    %5 = arith.addf %2, %4 : vector<64x128xf32>
    %c0_5 = arith.constant 0 : index
    %c0_6 = arith.constant 0 : index
    %6 = vector.load %arg4[%c0_5, %c0_6] : memref<64x128xf32, #tpu.memory_space<vmem>>, vector<64x128xf32>
    tpu.vector_store %arg4[%c0_5, %c0_6], %5 {strides = array<i32>} : memref<64x128xf32, #tpu.memory_space<vmem>>, vector<64x128xf32>,
    return
  }
  func.func @transform_0(%arg0: i32) -> (i32, i32) {
    %c0_i32 = arith.constant 0 : i32
    %c0_i32_0 = arith.constant 0 : i32
    return %arg0, %c0_i32 : i32, i32
  }
  func.func @transform_1(%arg0: i32) -> (i32, i32) {
    %c0_i32 = arith.constant 0 : i32
    %c0_i32_0 = arith.constant 0 : i32
    %c0_i32_1 = arith.constant 0 : i32
    return %c0_i32, %c0_i32_0 : i32, i32
  }
  func.func @transform_2(%arg0: i32) -> (i32, i32) {
    %c0_i32 = arith.constant 0 : i32
    %c0_i32_0 = arith.constant 0 : i32
    %c0_i32_1 = arith.constant 0 : i32
    return %c0_i32, %c0_i32_0 : i32, i32
  }
  func.func @transform_3(%arg0: i32) -> (i32, i32) {
    %c0_i32 = arith.constant 0 : i32
    %c0_i32_0 = arith.constant 0 : i32
    return %arg0, %c0_i32 : i32, i32
  }
}

</mosaic_0001>

<llo_original>
// kernel: tpu_custom_call.1
$region0: #{tpu_custom_call.1}
  #allocation0 [shape = 'u32[]', space=smem, size = 0x4, offset = 0x4, fixed_abs, tag = 'smem constant byte address 0x4 - core index']
  #allocation1 [shape = 'u32[144,128]{1,0:T(1,128)}', space=vmem, size = 0x12000, scoped, tag = 'internal scratch']
  %s0 = inlined_call_operand.hbm [shape: f32[64,128], index: 0, kind: input, shape index: {}]
  %s1 = inlined_call_operand.hbm [shape: f32[128,128], index: 1, kind: input, shape index: {}]
  %s2 = inlined_call_operand.vmem [shape: f32[1,128], index: 2, kind: input, shape index: {}]
  %s3 = inlined_call_operand.hbm [shape: f32[64,128], index: 3, kind: output, shape index: {}]
  %s4 = sld [smem:[#allocation0]]
  $region30: #{tpu_custom_call.1} parent=0
    _
  %s6 = ssub.s32 1, %s4
  %s7 = scalar_select 0, %s6, %s4
  $region1: #{tpu_custom_call.1} parent=0
    #allocation2 [shape = 'u8[32768]{0}', space=vmem, size = 0x8000, scoped, tag = 'input window, operand 0, single buffered']
    #allocation3 [shape = 's32[1]{0}', space=sflag, size = 0x4, scoped, tag = 'scoped memory for tpu_custom_call.1']
    #allocation4 [shape = 's32[1]{0}', space=sflag, size = 0x4, scoped, tag = 'scoped memory for tpu_custom_call.1']
    #allocation5 [shape = 'u8[65536]{0}', space=vmem, size = 0x10000, scoped, tag = 'input window, operand 1, single buffered']
    #allocation6 [shape = 's32[1]{0}', space=sflag, size = 0x4, scoped, tag = 'scoped memory for tpu_custom_call.1']
    #allocation7 [shape = 'u8[32768]{0}', space=vmem, size = 0x8000, scoped, tag = 'output window, operand 0, single buffered']
    %8 = vsyncpa [#allocation3], 0
    %9 = vsyncpa [#allocation6], 0
    %10 = vsyncpa [#allocation4], 0
    // Predicated region
    $region2: #{tpu_custom_call.1} parent=1 // pred_check
      _
    $region3: #{tpu_custom_call.1} parent=1 // pred_check_branch
      %12 = sbr.rel (0) target = $region5
    $region4: #{tpu_custom_call.1} parent=1 // pred_region
      %s14 = ssub.s32 1024, 1024
      %15 = vsyncadd [#allocation3], %s14
      %s16 = sshll.u32 [#allocation2], 4
      %s17 = int_to_ptr.vmem [resolvable:$true] %s16
      %22 = dma.hbm_to_vmem [thread:$0]  %s0, 1024, %s17, [#allocation3], 128, 128, 8
    $region5: #{tpu_custom_call.1} parent=1 // pred_fallthru
      _
    // Predicated region
    $region6: #{tpu_custom_call.1} parent=1 // pred_check
      _
    $region7: #{tpu_custom_call.1} parent=1 // pred_check_branch
      %24 = sbr.rel (0) target = $region9
    $region8: #{tpu_custom_call.1} parent=1 // pred_region
      %s26 = ssub.s32 2048, 2048
      %27 = vsyncadd [#allocation6], %s26
      %s28 = sshll.u32 [#allocation5], 4
      %s29 = int_to_ptr.vmem [resolvable:$true] %s28
      %34 = dma.hbm_to_vmem [thread:$0]  %s1, 2048, %s29, [#allocation6], 128, 128, 8
    $region9: #{tpu_custom_call.1} parent=1 // pred_fallthru
      _
    // Predicated region
    $region10: #{tpu_custom_call.1} parent=1 // pred_check
      _
    $region11: #{tpu_custom_call.1} parent=1 // pred_check_branch
      %36 = sbr.rel (0) target = $region13
    $region12: #{tpu_custom_call.1} parent=1 // pred_region
      _
    $region13: #{tpu_custom_call.1} parent=1 // pred_fallthru
      _
    // Predicated region
    $region14: #{tpu_custom_call.1} parent=1 // pred_check
      _
    $region15: #{tpu_custom_call.1} parent=1 // pred_check_branch
      %38 = sbr.rel (0) target = $region17
    $region16: #{tpu_custom_call.1} parent=1 // pred_region
      %39 = dma.done [#allocation3], 1024
    $region17: #{tpu_custom_call.1} parent=1 // pred_fallthru
      _
    // Predicated region
    $region18: #{tpu_custom_call.1} parent=1 // pred_check
      _
    $region19: #{tpu_custom_call.1} parent=1 // pred_check_branch
      %41 = sbr.rel (0) target = $region21
    $region20: #{tpu_custom_call.1} parent=1 // pred_region
      %42 = dma.done [#allocation6], 2048
    $region21: #{tpu_custom_call.1} parent=1 // pred_fallthru
      _
    %v43 = vld [vmem:[#allocation2] sm:$0xff]
    %v44 = vld [vmem:[#allocation2 + $0x8] sm:$0xff]
    %v45 = vld [vmem:[#allocation2 + $0x10] sm:$0xff]
    %v46 = vld [vmem:[#allocation2 + $0x18] sm:$0xff]
    %v47 = vld [vmem:[#allocation2 + $0x20] sm:$0xff]
    %v48 = vld [vmem:[#allocation2 + $0x28] sm:$0xff]
    %v49 = vld [vmem:[#allocation2 + $0x30] sm:$0xff]
    %v50 = vld [vmem:[#allocation2 + $0x38] sm:$0xff]
    %v51 = vld [vmem:[#allocation5] sm:$0xff]
    %v52 = vld [vmem:[#allocation5 + $0x8] sm:$0xff]
    %v53 = vld [vmem:[#allocation5 + $0x10] sm:$0xff]
    %v54 = vld [vmem:[#allocation5 + $0x18] sm:$0xff]
    %v55 = vld [vmem:[#allocation5 + $0x20] sm:$0xff]
    %v56 = vld [vmem:[#allocation5 + $0x28] sm:$0xff]
    %v57 = vld [vmem:[#allocation5 + $0x30] sm:$0xff]
    %v58 = vld [vmem:[#allocation5 + $0x38] sm:$0xff]
    %v59 = vld [vmem:[#allocation5 + $0x40] sm:$0xff]
    %v60 = vld [vmem:[#allocation5 + $0x48] sm:$0xff]
    %v61 = vld [vmem:[#allocation5 + $0x50] sm:$0xff]
    %v62 = vld [vmem:[#allocation5 + $0x58] sm:$0xff]
    %v63 = vld [vmem:[#allocation5 + $0x60] sm:$0xff]
    %v64 = vld [vmem:[#allocation5 + $0x68] sm:$0xff]
    %v65 = vld [vmem:[#allocation5 + $0x70] sm:$0xff]
    %v66 = vld [vmem:[#allocation5 + $0x78] sm:$0xff]
    %v67 = vld [vmem:[%s2] sm:$0x1]
    %v69 = vlaneseq
    %v70 = vshrl.u32 %v69, 7
    %v71 = vsub.s32 0, %v70
    %v72 = vrot.slane %v67, %v71
    %74 = vmatprep.subr.mxu0 0.0
    %75 = vmatpush1.msra.mxu0 %v51
    %76 = vmatprep.subr.mxu0 0.0
    %77 = vmatpush1.msra.mxu0 %v52
    %78 = vmatprep.subr.mxu0 0.0
    %79 = vmatpush1.msra.mxu0 %v53
    %80 = vmatprep.subr.mxu0 0.0
    %81 = vmatpush1.msra.mxu0 %v54
    %82 = vmatprep.subr.mxu0 0.0
    %83 = vmatpush1.msra.mxu0 %v55
    %84 = vmatprep.subr.mxu0 0.0
    %85 = vmatpush1.msra.mxu0 %v56
    %86 = vmatprep.subr.mxu0 0.0
    %87 = vmatpush1.msra.mxu0 %v57
    %88 = vmatprep.subr.mxu0 0.0
    %89 = vmatpush1.msra.mxu0 %v58
    %90 = vmatprep.subr.mxu0 0.0
    %91 = vmatpush1.msra.mxu0 %v59
    %92 = vmatprep.subr.mxu0 0.0
    %93 = vmatpush1.msra.mxu0 %v60
    %94 = vmatprep.subr.mxu0 0.0
    %95 = vmatpush1.msra.mxu0 %v61
    %96 = vmatprep.subr.mxu0 0.0
    %97 = vmatpush1.msra.mxu0 %v62
    %98 = vmatprep.subr.mxu0 0.0
    %99 = vmatpush1.msra.mxu0 %v63
    %100 = vmatprep.subr.mxu0 0.0
    %101 = vmatpush1.msra.mxu0 %v64
    %102 = vmatprep.subr.mxu0 0.0
    %103 = vmatpush1.msra.mxu0 %v65
    %104 = vmatprep.subr.mxu0 0.0
    %105 = vmatpush1.msra.mxu0 %v66
    %106 = vmatprep.subr.mxu0 0.0
    %107 = vmatpush1.msra.mxu0 0.0
    %108 = vmatprep.subr.mxu0 0.0
    %109 = vmatpush1.msra.mxu0 0.0
    %110 = vmatprep.subr.mxu0 0.0
    %111 = vmatpush1.msra.mxu0 0.0
    %112 = vmatprep.subr.mxu0 0.0
    %113 = vmatpush1.msra.mxu0 0.0
    %114 = vmatprep.subr.mxu0 0.0
    %115 = vmatpush1.msra.mxu0 0.0
    %116 = vmatprep.subr.mxu0 0.0
    %117 = vmatpush1.msra.mxu0 0.0
    %118 = vmatprep.subr.mxu0 0.0
    %119 = vmatpush1.msra.mxu0 0.0
    %120 = vmatprep.subr.mxu0 0.0
    %121 = vmatpush1.msra.mxu0 0.0
    %122 = vmatprep.subr.mxu0 0.0
    %123 = vmatpush1.msra.mxu0 0.0
    %124 = vmatprep.subr.mxu0 0.0
    %125 = vmatpush1.msra.mxu0 0.0
    %126 = vmatprep.subr.mxu0 0.0
    %127 = vmatpush1.msra.mxu0 0.0
    %128 = vmatprep.subr.mxu0 0.0
    %129 = vmatpush1.msra.mxu0 0.0
    %130 = vmatprep.subr.mxu0 0.0
    %131 = vmatpush1.msra.mxu0 0.0
    %132 = vmatprep.subr.mxu0 0.0
    %133 = vmatpush1.msra.mxu0 0.0
    %134 = vmatprep.subr.mxu0 0.0
    %135 = vmatpush1.msra.mxu0 0.0
    %136 = vmatprep.subr.mxu0 0.0
    %137 = vmatpush1.msra.mxu0 0.0
    %138 = vmatprep.mubr.f32.mxu0 0.0
    %139 = vmatmul.mubr.f32.gmra.mrb[0].mxu0 %v43
    %v140 = vpop.f32.mrb[0].mxu0
    %v141 = vadd.f32 %v72, %v140
    %v142 = vpop.f32.mrb[0].mxu0
    %143 = vmatprep.mubr.f32.mxu0 0.0
    %144 = vmatmul.mubr.f32.gmra.mrb[0].mxu0 %v44
    %v145 = vpop.f32.mrb[0].mxu0
    %v146 = vadd.f32 %v72, %v145
    %v147 = vpop.f32.mrb[0].mxu0
    %148 = vmatprep.mubr.f32.mxu0 0.0
    %149 = vmatmul.mubr.f32.gmra.mrb[0].mxu0 %v45
    %v150 = vpop.f32.mrb[0].mxu0
    %v151 = vadd.f32 %v72, %v150
    %v152 = vpop.f32.mrb[0].mxu0
    %153 = vmatprep.mubr.f32.mxu0 0.0
    %154 = vmatmul.mubr.f32.gmra.mrb[0].mxu0 %v46
    %v155 = vpop.f32.mrb[0].mxu0
    %v156 = vadd.f32 %v72, %v155
    %v157 = vpop.f32.mrb[0].mxu0
    %158 = vmatprep.mubr.f32.mxu0 0.0
    %159 = vmatmul.mubr.f32.gmra.mrb[0].mxu0 %v47
    %v160 = vpop.f32.mrb[0].mxu0
    %v161 = vadd.f32 %v72, %v160
    %v162 = vpop.f32.mrb[0].mxu0
    %163 = vmatprep.mubr.f32.mxu0 0.0
    %164 = vmatmul.mubr.f32.gmra.mrb[0].mxu0 %v48
    %v165 = vpop.f32.mrb[0].mxu0
    %v166 = vadd.f32 %v72, %v165
    %v167 = vpop.f32.mrb[0].mxu0
    %168 = vmatprep.mubr.f32.mxu0 0.0
    %169 = vmatmul.mubr.f32.gmra.mrb[0].mxu0 %v49
    %v170 = vpop.f32.mrb[0].mxu0
    %v171 = vadd.f32 %v72, %v170
    %v172 = vpop.f32.mrb[0].mxu0
    %173 = vmatprep.mubr.f32.mxu0 0.0
    %174 = vmatmul.mubr.f32.gmra.mrb[0].mxu0 %v50
    %v175 = vpop.f32.mrb[0].mxu0
    %v176 = vadd.f32 %v72, %v175
    %v177 = vpop.f32.mrb[0].mxu0
    %178 = vdwg.mxu0
    %179 = vst [vmem:[#allocation7] sm:$0xff] %v141
    %180 = vst [vmem:[#allocation7 + $0x8] sm:$0xff] %v146
    %181 = vst [vmem:[#allocation7 + $0x10] sm:$0xff] %v151
    %182 = vst [vmem:[#allocation7 + $0x18] sm:$0xff] %v156
    %183 = vst [vmem:[#allocation7 + $0x20] sm:$0xff] %v161
    %184 = vst [vmem:[#allocation7 + $0x28] sm:$0xff] %v166
    %185 = vst [vmem:[#allocation7 + $0x30] sm:$0xff] %v171
    %186 = vst [vmem:[#allocation7 + $0x38] sm:$0xff] %v176
    // Predicated region
    $region22: #{tpu_custom_call.1} parent=1 // pred_check
      _
    $region23: #{tpu_custom_call.1} parent=1 // pred_check_branch
      %188 = sbr.rel (0) target = $region25
    $region24: #{tpu_custom_call.1} parent=1 // pred_region
      %s190 = ssub.s32 1024, 1024
      %191 = vsyncadd [#allocation4], %s190
      %s192 = sshll.u32 [#allocation7], 4
      %s193 = int_to_ptr.vmem [resolvable:$true] %s192
      %198 = dma.vmem_to_hbm [thread:$0]  %s193, 1024, %s3, [#allocation4], 128, 128, 8
    $region25: #{tpu_custom_call.1} parent=1 // pred_fallthru
      _
    // Predicated region
    $region26: #{tpu_custom_call.1} parent=1 // pred_check
      _
    $region27: #{tpu_custom_call.1} parent=1 // pred_check_branch
      %200 = sbr.rel (0) target = $region29
    $region28: #{tpu_custom_call.1} parent=1 // pred_region
      %201 = dma.done [#allocation4], 1024
    $region29: #{tpu_custom_call.1} parent=1 // pred_fallthru
      _
    %202 = vsyncpa [#allocation3], 1
    %203 = vsyncpa [#allocation6], 1
    %204 = vsyncpa [#allocation4], 1

</llo_original>
